<compile_context>
chip_gen: v7x
topology: tpu7x:2x2x1
jax: 0.10.0
libtpu: 0.0.40
codegen_flags: <defaults>
</compile_context>

<pallas_src>
import jax
import jax.numpy as jnp
from jax.experimental import pallas as pl
from jax.experimental.pallas import tpu as pltpu


def _round_up(n, m):
    return ((n + m - 1) // m) * m


def _pick_tiling(batch, tm_request):
    """Pick a batch tile (multiple of 128) and the padded batch size."""
    b128 = _round_up(max(batch, 1), 128)
    tm = min(_round_up(max(tm_request, 128), 128), b128)
    # v7x has 2 TensorCores per chip: prefer >= 2 parallel grid steps when the
    # batch allows it (no effect on single-TC v5e/v6e).
    if b128 >= 256 and tm > b128 // 2:
        tm = _round_up(b128 // 2, 128)
    b_pad = _round_up(batch, tm)
    return tm, b_pad


def _qnet_kernel(x_ref, a_ref, ws_ref, bs_ref, wa_ref, ba_ref,
                 wqs_ref, wqa_ref, bq_ref, wo_ref, bo_ref, out_ref):
    # fc_s / fc_a + ReLU (f32 accumulation on the MXU).
    h1 = jnp.dot(x_ref[...], ws_ref[...], preferred_element_type=jnp.float32)
    h1 = jnp.maximum(h1 + bs_ref[...], 0.0)
    h2 = jnp.dot(a_ref[...], wa_ref[...], preferred_element_type=jnp.float32)
    h2 = jnp.maximum(h2 + ba_ref[...], 0.0)

    # fc_q on the implicit concatenation:
    #   cat([h1, h2]) @ Wq == h1 @ Wq[:64] + h2 @ Wq[64:]
    q = (jnp.dot(h1, wqs_ref[...], preferred_element_type=jnp.float32)
         + jnp.dot(h2, wqa_ref[...], preferred_element_type=jnp.float32)
         + bq_ref[...])
    q = jnp.maximum(q, 0.0)

    # fc_out, lane-dense: contract the 32-dim of (1,32) x (tm,32) -> (1, tm),
    # so the output block is unmasked, full-lane stores.
    out = jax.lax.dot_general(
        wo_ref[...], q, (((1,), (1,)), ((), ())),
        preferred_element_type=jnp.float32)
    out_ref[...] = (out + bo_ref[...]).astype(out_ref.dtype)


def prepare_params(params):
    """One-time repacking of (fc_s, fc_a, fc_q, fc_out) params for the kernel.

    `params` holds weights pre-transposed as (in_features, out_features)."""
    (ws_t, bs), (wa_t, ba), (wq_t, bq), (wo_t, bo) = params
    return (
        ws_t,                    # (S, 64)
        bs.reshape(1, 64),
        wa_t,                    # (A, 64)
        ba.reshape(1, 64),
        wq_t[:64],               # (64, 32) -- top half of fc_q, acts on h1
        wq_t[64:],               # (64, 32) -- bottom half of fc_q, acts on h2
        bq.reshape(1, 32),
        wo_t.reshape(1, 32),     # row vector for the lane-dense last layer
        bo.reshape(1, 1),
    )


def qnet_forward(x, a, prepared, *, tm=4096):
    """x: (B, state_space) f32, a: (B, action_space) f32 -> (B, 1) f32."""
    B, S = x.shape
    A = a.shape[1]
    ws, bs, wa, ba, wqs, wqa, bq, wo, bo = prepared

    tm, b_pad = _pick_tiling(B, tm)
    if b_pad != B:
        # Only the ragged tail is padded; when B % tm == 0 there is no wrapper
        # copy of the batch stream at all.
        x = jnp.pad(x, ((0, b_pad - B), (0, 0)))
        a = jnp.pad(a, ((0, b_pad - B), (0, 0)))

    grid = (b_pad // tm,)

    weight_bytes = sum(int(w.size) * w.dtype.itemsize
                       for w in (ws, bs, wa, ba, wqs, wqa, bq, wo, bo))
    cost = pl.CostEstimate(
        flops=2 * b_pad * (S * 64 + A * 64 + 128 * 32 + 32),
        transcendentals=0,
        bytes_accessed=(b_pad * (S + A) * x.dtype.itemsize
                        + b_pad * 4 + weight_bytes),
    )

    # ~5 KiB/f32 row covers double-buffered x/a tiles (lane-padded), the
    # intermediates and the lane-dense output; < 64 MiB at the default tm,
    # so the limit is valid on v7x as well as v5e/v6e.
    vmem_limit = int(min(max(32 << 20, 5 * 1024 * tm), 112 << 20))

    const = lambda i: (0, 0)
    out = pl.pallas_call(
        _qnet_kernel,
        out_shape=jax.ShapeDtypeStruct((1, b_pad), jnp.float32),
        grid=grid,
        in_specs=[
            pl.BlockSpec((tm, S), lambda i: (i, 0)),   # x: tiled over batch
            pl.BlockSpec((tm, A), lambda i: (i, 0)),   # a: tiled over batch
            pl.BlockSpec(ws.shape, const),             # weights / biases stay
            pl.BlockSpec(bs.shape, const),             # VMEM-resident
            pl.BlockSpec(wa.shape, const),
            pl.BlockSpec(ba.shape, const),
            pl.BlockSpec(wqs.shape, const),
            pl.BlockSpec(wqa.shape, const),
            pl.BlockSpec(bq.shape, const),
            pl.BlockSpec(wo.shape, const),
            pl.BlockSpec(bo.shape, const),
        ],
        out_specs=pl.BlockSpec((1, tm), lambda i: (0, i)),   # lane-dense output
        compiler_params=pltpu.CompilerParams(
            dimension_semantics=("parallel",),   # dual-TC shard on v7x
            vmem_limit_bytes=vmem_limit),
        cost_estimate=cost,
    )(x, a, ws, bs, wa, ba, wqs, wqa, bq, wo, bo)

    return out[0, :B].reshape(B, 1)


def init_params(key, state_space, action_space):
    """Init mimicking torch.nn.Linear defaults (U(-1/sqrt(fan_in), +1/sqrt(fan_in))).

    Weights are stored pre-transposed as (in_features, out_features)."""
    def linear(key, fan_in, fan_out):
        kw, kb = jax.random.split(key)
        bound = 1.0 / jnp.sqrt(float(fan_in))
        w_t = jax.random.uniform(kw, (fan_in, fan_out), jnp.float32, -bound, bound)
        b = jax.random.uniform(kb, (fan_out,), jnp.float32, -bound, bound)
        return w_t, b

    k1, k2, k3, k4 = jax.random.split(key, 4)
    fc_s = linear(k1, state_space, 64)
    fc_a = linear(k2, action_space, 64)
    fc_q = linear(k3, 128, 32)
    fc_out = linear(k4, 32, 1)
    return fc_s, fc_a, fc_q, fc_out


def qnet_ref(x, a, params):
    """Plain-JAX reference matching the PyTorch forward exactly."""
    (ws_t, bs), (wa_t, ba), (wq_t, bq), (wo_t, bo) = params
    with jax.default_matmul_precision("highest"):
        h1 = jax.nn.relu(x @ ws_t + bs)
        h2 = jax.nn.relu(a @ wa_t + ba)
        cat = jnp.concatenate([h1, h2], axis=1)
        q = jax.nn.relu(cat @ wq_t + bq)
        return q @ wo_t + bo


if __name__ == "__main__":
    state_space = 8
    action_space = 4
    batch = 2

    key = jax.random.PRNGKey(0)
    kx, ka, kp = jax.random.split(key, 3)

    x = jax.random.normal(kx, (batch, state_space), jnp.float32)
    a = jax.random.normal(ka, (batch, action_space), jnp.float32)
    params = init_params(kp, state_space, action_space)
    prepared = prepare_params(params)   # one-time repacking, reused every call

    # Small-batch path (single padded tile).
    out = jax.block_until_ready(qnet_forward(x, a, prepared))
    ref = qnet_ref(x, a, params)
    assert out.shape == (batch, 1), out.shape
    assert jnp.allclose(out, ref, atol=1e-4, rtol=1e-4), (out, ref)

    # Larger batch exercising the multi-tile grid + ragged-tail padding.
    big_b = 300
    kx2, ka2 = jax.random.split(jax.random.PRNGKey(1))
    xb = jax.random.normal(kx2, (big_b, state_space), jnp.float32)
    ab = jax.random.normal(ka2, (big_b, action_space), jnp.float32)
    out_b = jax.block_until_ready(qnet_forward(xb, ab, prepared, tm=128))
    ref_b = qnet_ref(xb, ab, params)
    assert out_b.shape == (big_b, 1), out_b.shape
    assert jnp.allclose(out_b, ref_b, atol=1e-4, rtol=1e-4)

    # Default large tile path on the same data (tile auto-split for >=2 steps).
    out_c = jax.block_until_ready(qnet_forward(xb, ab, prepared))
    assert jnp.allclose(out_c, ref_b, atol=1e-4, rtol=1e-4)

    print("KERNEL_OK")
</pallas_src>

<mosaic_0001>
module attributes {stable_mosaic.version = 11 : i64} {
  func.func @_qnet_kernel(%arg0: i32, %arg1: memref<128x8xf32, #tpu.memory_space<vmem>>, %arg2: memref<128x4xf32, #tpu.memory_space<vmem>>, %arg3: memref<8x64xf32, #tpu.memory_space<vmem>>, %arg4: memref<1x64xf32, #tpu.memory_space<vmem>>, %arg5: memref<4x64xf32, #tpu.memory_space<vmem>>, %arg6: memref<1x64xf32, #tpu.memory_space<vmem>>, %arg7: memref<64x32xf32, #tpu.memory_space<vmem>>, %arg8: memref<64x32xf32, #tpu.memory_space<vmem>>, %arg9: memref<1x32xf32, #tpu.memory_space<vmem>>, %arg10: memref<1x32xf32, #tpu.memory_space<vmem>>, %arg11: memref<1x1xf32, #tpu.memory_space<vmem>>, %arg12: memref<1x128xf32, #tpu.memory_space<vmem>>) attributes {dimension_semantics = [#tpu.dimension_semantics<parallel>], iteration_bounds = array<i64: 1>, scalar_prefetch = 0 : i64, scratch_operands = 0 : i64, tpu.core_type = #tpu.core_type<tc>, window_params = [{transform_indices = @transform_0, window_bounds = array<i64: 128, 8>}, {transform_indices = @transform_1, window_bounds = array<i64: 128, 4>}, {pipeline_mode = #tpu.pipeline_mode<synchronous>, transform_indices = @transform_2, window_bounds = array<i64: 8, 64>}, {pipeline_mode = #tpu.pipeline_mode<synchronous>, transform_indices = @transform_3, window_bounds = array<i64: 1, 64>}, {pipeline_mode = #tpu.pipeline_mode<synchronous>, transform_indices = @transform_4, window_bounds = array<i64: 4, 64>}, {pipeline_mode = #tpu.pipeline_mode<synchronous>, transform_indices = @transform_5, window_bounds = array<i64: 1, 64>}, {pipeline_mode = #tpu.pipeline_mode<synchronous>, transform_indices = @transform_6, window_bounds = array<i64: 64, 32>}, {pipeline_mode = #tpu.pipeline_mode<synchronous>, transform_indices = @transform_7, window_bounds = array<i64: 64, 32>}, {pipeline_mode = #tpu.pipeline_mode<synchronous>, transform_indices = @transform_8, window_bounds = array<i64: 1, 32>}, {pipeline_mode = #tpu.pipeline_mode<synchronous>, transform_indices = @transform_9, window_bounds = array<i64: 1, 32>}, {pipeline_mode = #tpu.pipeline_mode<synchronous>, transform_indices = @transform_10, window_bounds = array<i64: 1, 1>}, {transform_indices = @transform_11, window_bounds = array<i64: 1, 128>}]} {
    %c0 = arith.constant 0 : index
    %c0_0 = arith.constant 0 : index
    %0 = vector.load %arg1[%c0, %c0_0] : memref<128x8xf32, #tpu.memory_space<vmem>>, vector<128x8xf32>
    %c0_1 = arith.constant 0 : index
    %c0_2 = arith.constant 0 : index
    %1 = vector.load %arg3[%c0_1, %c0_2] : memref<8x64xf32, #tpu.memory_space<vmem>>, vector<8x64xf32>
    %cst = arith.constant dense<0.000000e+00> : vector<128x64xf32>
    %2 = tpu.matmul %0, %1, %cst {dimension_numbers = #tpu.dot_dimension_numbers<[1], [0], [0], [1], [0, 0, 1, 1], [], []>} : vector<128x8xf32>, vector<8x64xf32>, vector<128x64xf32> -> vector<128x64xf32>
    %c0_3 = arith.constant 0 : index
    %c0_4 = arith.constant 0 : index
    %3 = vector.load %arg4[%c0_3, %c0_4] : memref<1x64xf32, #tpu.memory_space<vmem>>, vector<1x64xf32>
    %4 = vector.broadcast %3 : vector<1x64xf32> to vector<128x64xf32>
    %5 = arith.addf %2, %4 : vector<128x64xf32>
    %cst_5 = arith.constant 0.000000e+00 : f32
    %6 = vector.broadcast %cst_5 : f32 to vector<128x64xf32>
    %7 = arith.maximumf %5, %6 : vector<128x64xf32>
    %c0_6 = arith.constant 0 : index
    %c0_7 = arith.constant 0 : index
    %8 = vector.load %arg2[%c0_6, %c0_7] : memref<128x4xf32, #tpu.memory_space<vmem>>, vector<128x4xf32>
    %c0_8 = arith.constant 0 : index
    %c0_9 = arith.constant 0 : index
    %9 = vector.load %arg5[%c0_8, %c0_9] : memref<4x64xf32, #tpu.memory_space<vmem>>, vector<4x64xf32>
    %cst_10 = arith.constant dense<0.000000e+00> : vector<128x64xf32>
    %10 = tpu.matmul %8, %9, %cst_10 {dimension_numbers = #tpu.dot_dimension_numbers<[1], [0], [0], [1], [0, 0, 1, 1], [], []>} : vector<128x4xf32>, vector<4x64xf32>, vector<128x64xf32> -> vector<128x64xf32>
    %c0_11 = arith.constant 0 : index
    %c0_12 = arith.constant 0 : index
    %11 = vector.load %arg6[%c0_11, %c0_12] : memref<1x64xf32, #tpu.memory_space<vmem>>, vector<1x64xf32>
    %12 = vector.broadcast %11 : vector<1x64xf32> to vector<128x64xf32>
    %13 = arith.addf %10, %12 : vector<128x64xf32>
    %cst_13 = arith.constant 0.000000e+00 : f32
    %14 = vector.broadcast %cst_13 : f32 to vector<128x64xf32>
    %15 = arith.maximumf %13, %14 : vector<128x64xf32>
    %c0_14 = arith.constant 0 : index
    %c0_15 = arith.constant 0 : index
    %16 = vector.load %arg7[%c0_14, %c0_15] : memref<64x32xf32, #tpu.memory_space<vmem>>, vector<64x32xf32>
    %cst_16 = arith.constant dense<0.000000e+00> : vector<128x32xf32>
    %17 = tpu.matmul %7, %16, %cst_16 {dimension_numbers = #tpu.dot_dimension_numbers<[1], [0], [0], [1], [0, 0, 1, 1], [], []>} : vector<128x64xf32>, vector<64x32xf32>, vector<128x32xf32> -> vector<128x32xf32>
    %c0_17 = arith.constant 0 : index
    %c0_18 = arith.constant 0 : index
    %18 = vector.load %arg8[%c0_17, %c0_18] : memref<64x32xf32, #tpu.memory_space<vmem>>, vector<64x32xf32>
    %cst_19 = arith.constant dense<0.000000e+00> : vector<128x32xf32>
    %19 = tpu.matmul %15, %18, %cst_19 {dimension_numbers = #tpu.dot_dimension_numbers<[1], [0], [0], [1], [0, 0, 1, 1], [], []>} : vector<128x64xf32>, vector<64x32xf32>, vector<128x32xf32> -> vector<128x32xf32>
    %20 = arith.addf %17, %19 : vector<128x32xf32>
    %c0_20 = arith.constant 0 : index
    %c0_21 = arith.constant 0 : index
    %21 = vector.load %arg9[%c0_20, %c0_21] : memref<1x32xf32, #tpu.memory_space<vmem>>, vector<1x32xf32>
    %22 = vector.broadcast %21 : vector<1x32xf32> to vector<128x32xf32>
    %23 = arith.addf %20, %22 : vector<128x32xf32>
    %cst_22 = arith.constant 0.000000e+00 : f32
    %24 = vector.broadcast %cst_22 : f32 to vector<128x32xf32>
    %25 = arith.maximumf %23, %24 : vector<128x32xf32>
    %c0_23 = arith.constant 0 : index
    %c0_24 = arith.constant 0 : index
    %26 = vector.load %arg10[%c0_23, %c0_24] : memref<1x32xf32, #tpu.memory_space<vmem>>, vector<1x32xf32>
    %cst_25 = arith.constant dense<0.000000e+00> : vector<1x128xf32>
    %27 = tpu.matmul %26, %25, %cst_25 {dimension_numbers = #tpu.dot_dimension_numbers<[1], [1], [0], [0], [0, 0, 1, 0], [], []>} : vector<1x32xf32>, vector<128x32xf32>, vector<1x128xf32> -> vector<1x128xf32>
    %c0_26 = arith.constant 0 : index
    %c0_27 = arith.constant 0 : index
    %28 = vector.load %arg11[%c0_26, %c0_27] : memref<1x1xf32, #tpu.memory_space<vmem>>, vector<1x1xf32>
    %29 = vector.broadcast %28 : vector<1x1xf32> to vector<1x128xf32>
    %30 = arith.addf %27, %29 : vector<1x128xf32>
    %c0_28 = arith.constant 0 : index
    %c0_29 = arith.constant 0 : index
    %31 = vector.load %arg12[%c0_28, %c0_29] : memref<1x128xf32, #tpu.memory_space<vmem>>, vector<1x128xf32>
    tpu.vector_store %arg12[%c0_28, %c0_29], %30 {strides = array<i32>} : memref<1x128xf32, #tpu.memory_space<vmem>>, vector<1x128xf32>,
    return
  }
  func.func @transform_0(%arg0: i32) -> (i32, i32) {
    %c0_i32 = arith.constant 0 : i32
    %c0_i32_0 = arith.constant 0 : i32
    return %arg0, %c0_i32 : i32, i32
  }
  func.func @transform_1(%arg0: i32) -> (i32, i32) {
    %c0_i32 = arith.constant 0 : i32
    %c0_i32_0 = arith.constant 0 : i32
    return %arg0, %c0_i32 : i32, i32
  }
  func.func @transform_2(%arg0: i32) -> (i32, i32) {
    %c0_i32 = arith.constant 0 : i32
    %c0_i32_0 = arith.constant 0 : i32
    %c0_i32_1 = arith.constant 0 : i32
    return %c0_i32, %c0_i32_0 : i32, i32
  }
  func.func @transform_3(%arg0: i32) -> (i32, i32) {
    %c0_i32 = arith.constant 0 : i32
    %c0_i32_0 = arith.constant 0 : i32
    %c0_i32_1 = arith.constant 0 : i32
    return %c0_i32, %c0_i32_0 : i32, i32
  }
  func.func @transform_4(%arg0: i32) -> (i32, i32) {
    %c0_i32 = arith.constant 0 : i32
    %c0_i32_0 = arith.constant 0 : i32
    %c0_i32_1 = arith.constant 0 : i32
    return %c0_i32, %c0_i32_0 : i32, i32
  }
  func.func @transform_5(%arg0: i32) -> (i32, i32) {
    %c0_i32 = arith.constant 0 : i32
    %c0_i32_0 = arith.constant 0 : i32
    %c0_i32_1 = arith.constant 0 : i32
    return %c0_i32, %c0_i32_0 : i32, i32
  }
  func.func @transform_6(%arg0: i32) -> (i32, i32) {
    %c0_i32 = arith.constant 0 : i32
    %c0_i32_0 = arith.constant 0 : i32
    %c0_i32_1 = arith.constant 0 : i32
    return %c0_i32, %c0_i32_0 : i32, i32
  }
  func.func @transform_7(%arg0: i32) -> (i32, i32) {
    %c0_i32 = arith.constant 0 : i32
    %c0_i32_0 = arith.constant 0 : i32
    %c0_i32_1 = arith.constant 0 : i32
    return %c0_i32, %c0_i32_0 : i32, i32
  }
  func.func @transform_8(%arg0: i32) -> (i32, i32) {
    %c0_i32 = arith.constant 0 : i32
    %c0_i32_0 = arith.constant 0 : i32
    %c0_i32_1 = arith.constant 0 : i32
    return %c0_i32, %c0_i32_0 : i32, i32
  }
  func.func @transform_9(%arg0: i32) -> (i32, i32) {
    %c0_i32 = arith.constant 0 : i32
    %c0_i32_0 = arith.constant 0 : i32
    %c0_i32_1 = arith.constant 0 : i32
    return %c0_i32, %c0_i32_0 : i32, i32
  }
  func.func @transform_10(%arg0: i32) -> (i32, i32) {
    %c0_i32 = arith.constant 0 : i32
    %c0_i32_0 = arith.constant 0 : i32
    %c0_i32_1 = arith.constant 0 : i32
    return %c0_i32, %c0_i32_0 : i32, i32
  }
  func.func @transform_11(%arg0: i32) -> (i32, i32) {
    %c0_i32 = arith.constant 0 : i32
    %c0_i32_0 = arith.constant 0 : i32
    return %c0_i32, %arg0 : i32, i32
  }
}

</mosaic_0001>

<llo_original>
// kernel: tpu_custom_call.1
$region0: #{tpu_custom_call.1}
  #allocation0 [shape = 'u32[]', space=smem, size = 0x4, offset = 0x4, fixed_abs, tag = 'smem constant byte address 0x4 - core index']
  #allocation1 [shape = 'u32[144,128]{1,0:T(1,128)}', space=vmem, size = 0x12000, scoped, tag = 'internal scratch']
  #allocation2 [shape = 'f32[1,1]{1,0:T(1,128)S(1)}', space=vmem, size = 0x200, scoped, tag = 'scoped memory for tpu_custom_call.1']
  %s0 = inlined_call_operand.vmem [shape: f32[128,8], index: 0, kind: input, shape index: {}]
  %s1 = inlined_call_operand.vmem [shape: f32[128,4], index: 1, kind: input, shape index: {}]
  %s2 = inlined_call_operand.vmem [shape: f32[8,64], index: 2, kind: input, shape index: {}]
  %s3 = inlined_call_operand.vmem [shape: f32[1,64], index: 3, kind: input, shape index: {}]
  %s4 = inlined_call_operand.vmem [shape: f32[4,64], index: 4, kind: input, shape index: {}]
  %s5 = inlined_call_operand.vmem [shape: f32[1,64], index: 5, kind: input, shape index: {}]
  %s6 = inlined_call_operand.vmem [shape: f32[64,32], index: 6, kind: input, shape index: {}]
  %s7 = inlined_call_operand.vmem [shape: f32[64,32], index: 7, kind: input, shape index: {}]
  %s8 = inlined_call_operand.vmem [shape: f32[1,32], index: 8, kind: input, shape index: {}]
  %s9 = inlined_call_operand.vmem [shape: f32[1,32], index: 9, kind: input, shape index: {}]
  %s10 = inlined_call_operand.<no memory space> [shape: f32[1,1], index: 10, kind: input, shape index: {}]
  %s11 = inlined_call_operand.hbm [shape: f32[1,128], index: 11, kind: output, shape index: {}]
  %s12 = sld [smem:[#allocation0]]
  $region54: #{tpu_custom_call.1} parent=0
    _
  %s14 = ssub.s32 1, %s12
  %s15 = scalar_select 0, %s14, %s12
  %v16 = vstv %s10
  %17 = vst [vmem:[#allocation2] sm:$0x1] %v16
  $region1: #{tpu_custom_call.1} parent=0
    #allocation3 [shape = 'u8[512]{0}', space=vmem, size = 0x400, scoped, tag = 'output window, operand 0, single buffered']
    #allocation4 [shape = 's32[1]{0}', space=sflag, size = 0x4, scoped, tag = 'scoped memory for tpu_custom_call.1']
    %18 = vsyncpa [#allocation4], 0
    // Predicated region
    $region2: #{tpu_custom_call.1} parent=1 // pred_check
      _
    $region3: #{tpu_custom_call.1} parent=1 // pred_check_branch
      %20 = sbr.rel (0) target = $region5
    $region4: #{tpu_custom_call.1} parent=1 // pred_region
      _
    $region5: #{tpu_custom_call.1} parent=1 // pred_fallthru
      _
    // Predicated region
    $region6: #{tpu_custom_call.1} parent=1 // pred_check
      _
    $region7: #{tpu_custom_call.1} parent=1 // pred_check_branch
      %22 = sbr.rel (0) target = $region9
    $region8: #{tpu_custom_call.1} parent=1 // pred_region
      _
    $region9: #{tpu_custom_call.1} parent=1 // pred_fallthru
      _
    // Predicated region
    $region10: #{tpu_custom_call.1} parent=1 // pred_check
      _
    $region11: #{tpu_custom_call.1} parent=1 // pred_check_branch
      %24 = sbr.rel (0) target = $region13
    $region12: #{tpu_custom_call.1} parent=1 // pred_region
      _
    $region13: #{tpu_custom_call.1} parent=1 // pred_fallthru
      _
    // Predicated region
    $region14: #{tpu_custom_call.1} parent=1 // pred_check
      _
    $region15: #{tpu_custom_call.1} parent=1 // pred_check_branch
      %26 = sbr.rel (0) target = $region17
    $region16: #{tpu_custom_call.1} parent=1 // pred_region
      _
    $region17: #{tpu_custom_call.1} parent=1 // pred_fallthru
      _
    // Predicated region
    $region18: #{tpu_custom_call.1} parent=1 // pred_check
      _
    $region19: #{tpu_custom_call.1} parent=1 // pred_check_branch
      %28 = sbr.rel (0) target = $region21
    $region20: #{tpu_custom_call.1} parent=1 // pred_region
      _
    $region21: #{tpu_custom_call.1} parent=1 // pred_fallthru
      _
    // Predicated region
    $region22: #{tpu_custom_call.1} parent=1 // pred_check
      _
    $region23: #{tpu_custom_call.1} parent=1 // pred_check_branch
      %30 = sbr.rel (0) target = $region25
    $region24: #{tpu_custom_call.1} parent=1 // pred_region
      _
    $region25: #{tpu_custom_call.1} parent=1 // pred_fallthru
      _
    // Predicated region
    $region26: #{tpu_custom_call.1} parent=1 // pred_check
      _
    $region27: #{tpu_custom_call.1} parent=1 // pred_check_branch
      %32 = sbr.rel (0) target = $region29
    $region28: #{tpu_custom_call.1} parent=1 // pred_region
      _
    $region29: #{tpu_custom_call.1} parent=1 // pred_fallthru
      _
    // Predicated region
    $region30: #{tpu_custom_call.1} parent=1 // pred_check
      _
    $region31: #{tpu_custom_call.1} parent=1 // pred_check_branch
      %34 = sbr.rel (0) target = $region33
    $region32: #{tpu_custom_call.1} parent=1 // pred_region
      _
    $region33: #{tpu_custom_call.1} parent=1 // pred_fallthru
      _
    // Predicated region
    $region34: #{tpu_custom_call.1} parent=1 // pred_check
      _
    $region35: #{tpu_custom_call.1} parent=1 // pred_check_branch
      %36 = sbr.rel (0) target = $region37
    $region36: #{tpu_custom_call.1} parent=1 // pred_region
      _
    $region37: #{tpu_custom_call.1} parent=1 // pred_fallthru
      _
    // Predicated region
    $region38: #{tpu_custom_call.1} parent=1 // pred_check
      _
    $region39: #{tpu_custom_call.1} parent=1 // pred_check_branch
      %38 = sbr.rel (0) target = $region41
    $region40: #{tpu_custom_call.1} parent=1 // pred_region
      _
    $region41: #{tpu_custom_call.1} parent=1 // pred_fallthru
      _
    // Predicated region
    $region42: #{tpu_custom_call.1} parent=1 // pred_check
      _
    $region43: #{tpu_custom_call.1} parent=1 // pred_check_branch
      %40 = sbr.rel (0) target = $region45
    $region44: #{tpu_custom_call.1} parent=1 // pred_region
      _
    $region45: #{tpu_custom_call.1} parent=1 // pred_fallthru
      _
    %v41 = vld [vmem:[%s0] sm:$0xff]
    %v42 = vld [vmem:[%s0 + $0x8] sm:$0xff]
    %v43 = vld [vmem:[%s0 + $0x10] sm:$0xff]
    %v44 = vld [vmem:[%s0 + $0x18] sm:$0xff]
    %v45 = vld [vmem:[%s0 + $0x20] sm:$0xff]
    %v46 = vld [vmem:[%s0 + $0x28] sm:$0xff]
    %v47 = vld [vmem:[%s0 + $0x30] sm:$0xff]
    %v48 = vld [vmem:[%s0 + $0x38] sm:$0xff]
    %v49 = vld [vmem:[%s0 + $0x40] sm:$0xff]
    %v50 = vld [vmem:[%s0 + $0x48] sm:$0xff]
    %v51 = vld [vmem:[%s0 + $0x50] sm:$0xff]
    %v52 = vld [vmem:[%s0 + $0x58] sm:$0xff]
    %v53 = vld [vmem:[%s0 + $0x60] sm:$0xff]
    %v54 = vld [vmem:[%s0 + $0x68] sm:$0xff]
    %v55 = vld [vmem:[%s0 + $0x70] sm:$0xff]
    %v56 = vld [vmem:[%s0 + $0x78] sm:$0xff]
    %v57 = vld [vmem:[%s2] sm:$0xff]
    %v58 = vld [vmem:[%s3] sm:$0x1]
    %v60 = vlaneseq
    %v61 = vshrl.u32 %v60, 7
    %v62 = vsub.s32 0, %v61
    %v63 = vrot.slane %v58, %v62
    %vm65 = vcmask 64512
    %v67 = vsel %vm65, %v41, 0
    %v70 = vsel %vm65, %v42, 0
    %v73 = vsel %vm65, %v43, 0
    %v76 = vsel %vm65, %v44, 0
    %v79 = vsel %vm65, %v45, 0
    %v82 = vsel %vm65, %v46, 0
    %v85 = vsel %vm65, %v47, 0
    %v88 = vsel %vm65, %v48, 0
    %v91 = vsel %vm65, %v49, 0
    %v94 = vsel %vm65, %v50, 0
    %v97 = vsel %vm65, %v51, 0
    %v100 = vsel %vm65, %v52, 0
    %v103 = vsel %vm65, %v53, 0
    %v106 = vsel %vm65, %v54, 0
    %v109 = vsel %vm65, %v55, 0
    %v112 = vsel %vm65, %v56, 0
    %114 = vmatprep.subr.mxu0 0.0
    %115 = vmatpush1.msra.mxu0 %v57
    %116 = vmatprep.subr.mxu0 0.0
    %117 = vmatpush1.msra.mxu0 0.0
    %118 = vmatprep.subr.mxu0 0.0
    %119 = vmatpush1.msra.mxu0 0.0
    %120 = vmatprep.subr.mxu0 0.0
    %121 = vmatpush1.msra.mxu0 0.0
    %122 = vmatprep.subr.mxu0 0.0
    %123 = vmatpush1.msra.mxu0 0.0
    %124 = vmatprep.subr.mxu0 0.0
    %125 = vmatpush1.msra.mxu0 0.0
    %126 = vmatprep.subr.mxu0 0.0
    %127 = vmatpush1.msra.mxu0 0.0
    %128 = vmatprep.subr.mxu0 0.0
    %129 = vmatpush1.msra.mxu0 0.0
    %130 = vmatprep.subr.mxu0 0.0
    %131 = vmatpush1.msra.mxu0 0.0
    %132 = vmatprep.subr.mxu0 0.0
    %133 = vmatpush1.msra.mxu0 0.0
    %134 = vmatprep.subr.mxu0 0.0
    %135 = vmatpush1.msra.mxu0 0.0
    %136 = vmatprep.subr.mxu0 0.0
    %137 = vmatpush1.msra.mxu0 0.0
    %138 = vmatprep.subr.mxu0 0.0
    %139 = vmatpush1.msra.mxu0 0.0
    %140 = vmatprep.subr.mxu0 0.0
    %141 = vmatpush1.msra.mxu0 0.0
    %142 = vmatprep.subr.mxu0 0.0
    %143 = vmatpush1.msra.mxu0 0.0
    %144 = vmatprep.subr.mxu0 0.0
    %145 = vmatpush1.msra.mxu0 0.0
    %146 = vmatprep.subr.mxu0 0.0
    %147 = vmatpush1.msra.mxu0 0.0
    %148 = vmatprep.subr.mxu0 0.0
    %149 = vmatpush1.msra.mxu0 0.0
    %150 = vmatprep.subr.mxu0 0.0
    %151 = vmatpush1.msra.mxu0 0.0
    %152 = vmatprep.subr.mxu0 0.0
    %153 = vmatpush1.msra.mxu0 0.0
    %154 = vmatprep.subr.mxu0 0.0
    %155 = vmatpush1.msra.mxu0 0.0
    %156 = vmatprep.subr.mxu0 0.0
    %157 = vmatpush1.msra.mxu0 0.0
    %158 = vmatprep.subr.mxu0 0.0
    %159 = vmatpush1.msra.mxu0 0.0
    %160 = vmatprep.subr.mxu0 0.0
    %161 = vmatpush1.msra.mxu0 0.0
    %162 = vmatprep.subr.mxu0 0.0
    %163 = vmatpush1.msra.mxu0 0.0
    %164 = vmatprep.subr.mxu0 0.0
    %165 = vmatpush1.msra.mxu0 0.0
    %166 = vmatprep.subr.mxu0 0.0
    %167 = vmatpush1.msra.mxu0 0.0
    %168 = vmatprep.subr.mxu0 0.0
    %169 = vmatpush1.msra.mxu0 0.0
    %170 = vmatprep.subr.mxu0 0.0
    %171 = vmatpush1.msra.mxu0 0.0
    %172 = vmatprep.subr.mxu0 0.0
    %173 = vmatpush1.msra.mxu0 0.0
    %174 = vmatprep.subr.mxu0 0.0
    %175 = vmatpush1.msra.mxu0 0.0
    %176 = vmatprep.subr.mxu0 0.0
    %177 = vmatpush1.msra.mxu0 0.0
    %178 = vmatprep.mubr.f32.mxu0 0.0
    %179 = vmatmul.mubr.f32.gmra.mrb[0].mxu0 %v67
    %v180 = vpop.f32.mrb[0].mxu0
    %v181 = vadd.f32 %v63, %v180
    %v182 = vpop.f32.mrb[0].mxu0
    %183 = vmatprep.mubr.f32.mxu0 0.0
    %184 = vmatmul.mubr.f32.gmra.mrb[0].mxu0 %v70
    %v185 = vpop.f32.mrb[0].mxu0
    %v186 = vadd.f32 %v63, %v185
    %v187 = vpop.f32.mrb[0].mxu0
    %188 = vmatprep.mubr.f32.mxu0 0.0
    %189 = vmatmul.mubr.f32.gmra.mrb[0].mxu0 %v73
    %v190 = vpop.f32.mrb[0].mxu0
    %v191 = vadd.f32 %v63, %v190
    %v192 = vpop.f32.mrb[0].mxu0
    %193 = vmatprep.mubr.f32.mxu0 0.0
    %194 = vmatmul.mubr.f32.gmra.mrb[0].mxu0 %v76
    %v195 = vpop.f32.mrb[0].mxu0
    %v196 = vadd.f32 %v63, %v195
    %v197 = vpop.f32.mrb[0].mxu0
    %198 = vmatprep.mubr.f32.mxu0 0.0
    %199 = vmatmul.mubr.f32.gmra.mrb[0].mxu0 %v79
    %v200 = vpop.f32.mrb[0].mxu0
    %v201 = vadd.f32 %v63, %v200
    %v202 = vpop.f32.mrb[0].mxu0
    %203 = vmatprep.mubr.f32.mxu0 0.0
    %204 = vmatmul.mubr.f32.gmra.mrb[0].mxu0 %v82
    %v205 = vpop.f32.mrb[0].mxu0
    %v206 = vadd.f32 %v63, %v205
    %v207 = vpop.f32.mrb[0].mxu0
    %208 = vmatprep.mubr.f32.mxu0 0.0
    %209 = vmatmul.mubr.f32.gmra.mrb[0].mxu0 %v85
    %v210 = vpop.f32.mrb[0].mxu0
    %v211 = vadd.f32 %v63, %v210
    %v212 = vpop.f32.mrb[0].mxu0
    %213 = vmatprep.mubr.f32.mxu0 0.0
    %214 = vmatmul.mubr.f32.gmra.mrb[0].mxu0 %v88
    %v215 = vpop.f32.mrb[0].mxu0
    %v216 = vadd.f32 %v63, %v215
    %v217 = vpop.f32.mrb[0].mxu0
    %218 = vmatprep.mubr.f32.mxu0 0.0
    %219 = vmatmul.mubr.f32.gmra.mrb[0].mxu0 %v91
    %v220 = vpop.f32.mrb[0].mxu0
    %v221 = vadd.f32 %v63, %v220
    %v222 = vpop.f32.mrb[0].mxu0
    %223 = vmatprep.mubr.f32.mxu0 0.0
    %224 = vmatmul.mubr.f32.gmra.mrb[0].mxu0 %v94
    %v225 = vpop.f32.mrb[0].mxu0
    %v226 = vadd.f32 %v63, %v225
    %v227 = vpop.f32.mrb[0].mxu0
    %228 = vmatprep.mubr.f32.mxu0 0.0
    %229 = vmatmul.mubr.f32.gmra.mrb[0].mxu0 %v97
    %v230 = vpop.f32.mrb[0].mxu0
    %v231 = vadd.f32 %v63, %v230
    %v232 = vpop.f32.mrb[0].mxu0
    %233 = vmatprep.mubr.f32.mxu0 0.0
    %234 = vmatmul.mubr.f32.gmra.mrb[0].mxu0 %v100
    %v235 = vpop.f32.mrb[0].mxu0
    %v236 = vadd.f32 %v63, %v235
    %v237 = vpop.f32.mrb[0].mxu0
    %238 = vmatprep.mubr.f32.mxu0 0.0
    %239 = vmatmul.mubr.f32.gmra.mrb[0].mxu0 %v103
    %v240 = vpop.f32.mrb[0].mxu0
    %v241 = vadd.f32 %v63, %v240
    %v242 = vpop.f32.mrb[0].mxu0
    %243 = vmatprep.mubr.f32.mxu0 0.0
    %244 = vmatmul.mubr.f32.gmra.mrb[0].mxu0 %v106
    %v245 = vpop.f32.mrb[0].mxu0
    %v246 = vadd.f32 %v63, %v245
    %v247 = vpop.f32.mrb[0].mxu0
    %248 = vmatprep.mubr.f32.mxu0 0.0
    %249 = vmatmul.mubr.f32.gmra.mrb[0].mxu0 %v109
    %v250 = vpop.f32.mrb[0].mxu0
    %v251 = vadd.f32 %v63, %v250
    %v252 = vpop.f32.mrb[0].mxu0
    %253 = vmatprep.mubr.f32.mxu0 0.0
    %254 = vmatmul.mubr.f32.gmra.mrb[0].mxu0 %v112
    %v255 = vpop.f32.mrb[0].mxu0
    %v256 = vadd.f32 %v63, %v255
    %v257 = vpop.f32.mrb[0].mxu0
    %258 = vdwg.mxu0
    %v259 = vmax.f32 %v181, 0.0
    %v260 = vmax.f32 %v186, 0.0
    %v261 = vmax.f32 %v191, 0.0
    %v262 = vmax.f32 %v196, 0.0
    %v263 = vmax.f32 %v201, 0.0
    %v264 = vmax.f32 %v206, 0.0
    %v265 = vmax.f32 %v211, 0.0
    %v266 = vmax.f32 %v216, 0.0
    %v267 = vmax.f32 %v221, 0.0
    %v268 = vmax.f32 %v226, 0.0
    %v269 = vmax.f32 %v231, 0.0
    %v270 = vmax.f32 %v236, 0.0
    %v271 = vmax.f32 %v241, 0.0
    %v272 = vmax.f32 %v246, 0.0
    %v273 = vmax.f32 %v251, 0.0
    %v274 = vmax.f32 %v256, 0.0
    %v275 = vld [vmem:[%s1] sm:$0xff]
    %v276 = vld [vmem:[%s1 + $0x8] sm:$0xff]
    %v277 = vld [vmem:[%s1 + $0x10] sm:$0xff]
    %v278 = vld [vmem:[%s1 + $0x18] sm:$0xff]
    %v279 = vld [vmem:[%s1 + $0x20] sm:$0xff]
    %v280 = vld [vmem:[%s1 + $0x28] sm:$0xff]
    %v281 = vld [vmem:[%s1 + $0x30] sm:$0xff]
    %v282 = vld [vmem:[%s1 + $0x38] sm:$0xff]
    %v283 = vld [vmem:[%s1 + $0x40] sm:$0xff]
    %v284 = vld [vmem:[%s1 + $0x48] sm:$0xff]
    %v285 = vld [vmem:[%s1 + $0x50] sm:$0xff]
    %v286 = vld [vmem:[%s1 + $0x58] sm:$0xff]
    %v287 = vld [vmem:[%s1 + $0x60] sm:$0xff]
    %v288 = vld [vmem:[%s1 + $0x68] sm:$0xff]
    %v289 = vld [vmem:[%s1 + $0x70] sm:$0xff]
    %v290 = vld [vmem:[%s1 + $0x78] sm:$0xff]
    %v291 = vld [vmem:[%s4] sm:$0xf]
    %v292 = vld [vmem:[%s5] sm:$0x1]
    %v294 = vlaneseq
    %v295 = vshrl.u32 %v294, 7
    %v296 = vsub.s32 0, %v295
    %v297 = vrot.slane %v292, %v296
    %vm299 = vcmask 31744
    %v301 = vsel %vm299, %v275, 0
    %v304 = vsel %vm299, %v276, 0
    %v307 = vsel %vm299, %v277, 0
    %v310 = vsel %vm299, %v278, 0
    %v313 = vsel %vm299, %v279, 0
    %v316 = vsel %vm299, %v280, 0
    %v319 = vsel %vm299, %v281, 0
    %v322 = vsel %vm299, %v282, 0
    %v325 = vsel %vm299, %v283, 0
    %v328 = vsel %vm299, %v284, 0
    %v331 = vsel %vm299, %v285, 0
    %v334 = vsel %vm299, %v286, 0
    %v337 = vsel %vm299, %v287, 0
    %v340 = vsel %vm299, %v288, 0
    %v343 = vsel %vm299, %v289, 0
    %v346 = vsel %vm299, %v290, 0
    %vm348 = vcmask 1043456
    %v350 = vsel %vm348, %v291, 0
    %352 = vmatprep.subr.mxu0 0.0
    %353 = vmatpush1.msra.mxu0 %v350
    %354 = vmatprep.subr.mxu0 0.0
    %355 = vmatpush1.msra.mxu0 0.0
    %356 = vmatprep.subr.mxu0 0.0
    %357 = vmatpush1.msra.mxu0 0.0
    %358 = vmatprep.subr.mxu0 0.0
    %359 = vmatpush1.msra.mxu0 0.0
    %360 = vmatprep.subr.mxu0 0.0
    %361 = vmatpush1.msra.mxu0 0.0
    %362 = vmatprep.subr.mxu0 0.0
    %363 = vmatpush1.msra.mxu0 0.0
    %364 = vmatprep.subr.mxu0 0.0
    %365 = vmatpush1.msra.mxu0 0.0
    %366 = vmatprep.subr.mxu0 0.0
    %367 = vmatpush1.msra.mxu0 0.0
    %368 = vmatprep.subr.mxu0 0.0
    %369 = vmatpush1.msra.mxu0 0.0
    %370 = vmatprep.subr.mxu0 0.0
    %371 = vmatpush1.msra.mxu0 0.0
    %372 = vmatprep.subr.mxu0 0.0
    %373 = vmatpush1.msra.mxu0 0.0
    %374 = vmatprep.subr.mxu0 0.0
    %375 = vmatpush1.msra.mxu0 0.0
    %376 = vmatprep.subr.mxu0 0.0
    %377 = vmatpush1.msra.mxu0 0.0
    %378 = vmatprep.subr.mxu0 0.0
    %379 = vmatpush1.msra.mxu0 0.0
    %380 = vmatprep.subr.mxu0 0.0
    %381 = vmatpush1.msra.mxu0 0.0
    %382 = vmatprep.subr.mxu0 0.0
    %383 = vmatpush1.msra.mxu0 0.0
    %384 = vmatprep.subr.mxu0 0.0
    %385 = vmatpush1.msra.mxu0 0.0
    %386 = vmatprep.subr.mxu0 0.0
    %387 = vmatpush1.msra.mxu0 0.0
    %388 = vmatprep.subr.mxu0 0.0
    %389 = vmatpush1.msra.mxu0 0.0
    %390 = vmatprep.subr.mxu0 0.0
    %391 = vmatpush1.msra.mxu0 0.0
    %392 = vmatprep.subr.mxu0 0.0
    %393 = vmatpush1.msra.mxu0 0.0
    %394 = vmatprep.subr.mxu0 0.0
    %395 = vmatpush1.msra.mxu0 0.0
    %396 = vmatprep.subr.mxu0 0.0
    %397 = vmatpush1.msra.mxu0 0.0
    %398 = vmatprep.subr.mxu0 0.0
    %399 = vmatpush1.msra.mxu0 0.0
    %400 = vmatprep.subr.mxu0 0.0
    %401 = vmatpush1.msra.mxu0 0.0
    %402 = vmatprep.subr.mxu0 0.0
    %403 = vmatpush1.msra.mxu0 0.0
    %404 = vmatprep.subr.mxu0 0.0
    %405 = vmatpush1.msra.mxu0 0.0
    %406 = vmatprep.subr.mxu0 0.0
    %407 = vmatpush1.msra.mxu0 0.0
    %408 = vmatprep.subr.mxu0 0.0
    %409 = vmatpush1.msra.mxu0 0.0
    %410 = vmatprep.subr.mxu0 0.0
    %411 = vmatpush1.msra.mxu0 0.0
    %412 = vmatprep.subr.mxu0 0.0
    %413 = vmatpush1.msra.mxu0 0.0
    %414 = vmatprep.subr.mxu0 0.0
    %415 = vmatpush1.msra.mxu0 0.0
    %416 = vmatprep.mubr.f32.mxu0 0.0
    %417 = vmatmul.mubr.f32.gmra.mrb[0].mxu0 %v301
    %v418 = vpop.f32.mrb[0].mxu0
    %v419 = vadd.f32 %v297, %v418
    %v420 = vpop.f32.mrb[0].mxu0
    %421 = vmatprep.mubr.f32.mxu0 0.0
    %422 = vmatmul.mubr.f32.gmra.mrb[0].mxu0 %v304
    %v423 = vpop.f32.mrb[0].mxu0
    %v424 = vadd.f32 %v297, %v423
    %v425 = vpop.f32.mrb[0].mxu0
    %426 = vmatprep.mubr.f32.mxu0 0.0
    %427 = vmatmul.mubr.f32.gmra.mrb[0].mxu0 %v307
    %v428 = vpop.f32.mrb[0].mxu0
    %v429 = vadd.f32 %v297, %v428
    %v430 = vpop.f32.mrb[0].mxu0
    %431 = vmatprep.mubr.f32.mxu0 0.0
    %432 = vmatmul.mubr.f32.gmra.mrb[0].mxu0 %v310
    %v433 = vpop.f32.mrb[0].mxu0
    %v434 = vadd.f32 %v297, %v433
    %v435 = vpop.f32.mrb[0].mxu0
    %436 = vmatprep.mubr.f32.mxu0 0.0
    %437 = vmatmul.mubr.f32.gmra.mrb[0].mxu0 %v313
    %v438 = vpop.f32.mrb[0].mxu0
    %v439 = vadd.f32 %v297, %v438
    %v440 = vpop.f32.mrb[0].mxu0
    %441 = vmatprep.mubr.f32.mxu0 0.0
    %442 = vmatmul.mubr.f32.gmra.mrb[0].mxu0 %v316
    %v443 = vpop.f32.mrb[0].mxu0
    %v444 = vadd.f32 %v297, %v443
    %v445 = vpop.f32.mrb[0].mxu0
    %446 = vmatprep.mubr.f32.mxu0 0.0
    %447 = vmatmul.mubr.f32.gmra.mrb[0].mxu0 %v319
    %v448 = vpop.f32.mrb[0].mxu0
    %v449 = vadd.f32 %v297, %v448
    %v450 = vpop.f32.mrb[0].mxu0
    %451 = vmatprep.mubr.f32.mxu0 0.0
    %452 = vmatmul.mubr.f32.gmra.mrb[0].mxu0 %v322
    %v453 = vpop.f32.mrb[0].mxu0
    %v454 = vadd.f32 %v297, %v453
    %v455 = vpop.f32.mrb[0].mxu0
    %456 = vmatprep.mubr.f32.mxu0 0.0
    %457 = vmatmul.mubr.f32.gmra.mrb[0].mxu0 %v325
    %v458 = vpop.f32.mrb[0].mxu0
    %v459 = vadd.f32 %v297, %v458
    %v460 = vpop.f32.mrb[0].mxu0
    %461 = vmatprep.mubr.f32.mxu0 0.0
    %462 = vmatmul.mubr.f32.gmra.mrb[0].mxu0 %v328
    %v463 = vpop.f32.mrb[0].mxu0
    %v464 = vadd.f32 %v297, %v463
    %v465 = vpop.f32.mrb[0].mxu0
    %466 = vmatprep.mubr.f32.mxu0 0.0
    %467 = vmatmul.mubr.f32.gmra.mrb[0].mxu0 %v331
    %v468 = vpop.f32.mrb[0].mxu0
    %v469 = vadd.f32 %v297, %v468
    %v470 = vpop.f32.mrb[0].mxu0
    %471 = vmatprep.mubr.f32.mxu0 0.0
    %472 = vmatmul.mubr.f32.gmra.mrb[0].mxu0 %v334
    %v473 = vpop.f32.mrb[0].mxu0
    %v474 = vadd.f32 %v297, %v473
    %v475 = vpop.f32.mrb[0].mxu0
    %476 = vmatprep.mubr.f32.mxu0 0.0
    %477 = vmatmul.mubr.f32.gmra.mrb[0].mxu0 %v337
    %v478 = vpop.f32.mrb[0].mxu0
    %v479 = vadd.f32 %v297, %v478
    %v480 = vpop.f32.mrb[0].mxu0
    %481 = vmatprep.mubr.f32.mxu0 0.0
    %482 = vmatmul.mubr.f32.gmra.mrb[0].mxu0 %v340
    %v483 = vpop.f32.mrb[0].mxu0
    %v484 = vadd.f32 %v297, %v483
    %v485 = vpop.f32.mrb[0].mxu0
    %486 = vmatprep.mubr.f32.mxu0 0.0
    %487 = vmatmul.mubr.f32.gmra.mrb[0].mxu0 %v343
    %v488 = vpop.f32.mrb[0].mxu0
    %v489 = vadd.f32 %v297, %v488
    %v490 = vpop.f32.mrb[0].mxu0
    %491 = vmatprep.mubr.f32.mxu0 0.0
    %492 = vmatmul.mubr.f32.gmra.mrb[0].mxu0 %v346
    %v493 = vpop.f32.mrb[0].mxu0
    %v494 = vadd.f32 %v297, %v493
    %v495 = vpop.f32.mrb[0].mxu0
    %496 = vdwg.mxu0
    %v497 = vmax.f32 %v419, 0.0
    %v498 = vmax.f32 %v424, 0.0
    %v499 = vmax.f32 %v429, 0.0
    %v500 = vmax.f32 %v434, 0.0
    %v501 = vmax.f32 %v439, 0.0
    %v502 = vmax.f32 %v444, 0.0
    %v503 = vmax.f32 %v449, 0.0
    %v504 = vmax.f32 %v454, 0.0
    %v505 = vmax.f32 %v459, 0.0
    %v506 = vmax.f32 %v464, 0.0
    %v507 = vmax.f32 %v469, 0.0
    %v508 = vmax.f32 %v474, 0.0
    %v509 = vmax.f32 %v479, 0.0
    %v510 = vmax.f32 %v484, 0.0
    %v511 = vmax.f32 %v489, 0.0
    %v512 = vmax.f32 %v494, 0.0
    %v513 = vld [vmem:[%s6] sm:$0xff]
    %v514 = vld [vmem:[%s6 + $0x8] sm:$0xff]
    %v515 = vld [vmem:[%s6 + $0x10] sm:$0xff]
    %v516 = vld [vmem:[%s6 + $0x18] sm:$0xff]
    %v517 = vld [vmem:[%s6 + $0x20] sm:$0xff]
    %v518 = vld [vmem:[%s6 + $0x28] sm:$0xff]
    %v519 = vld [vmem:[%s6 + $0x30] sm:$0xff]
    %v520 = vld [vmem:[%s6 + $0x38] sm:$0xff]
    %v521 = vld [vmem:[%s7] sm:$0xff]
    %v522 = vld [vmem:[%s7 + $0x8] sm:$0xff]
    %v523 = vld [vmem:[%s7 + $0x10] sm:$0xff]
    %v524 = vld [vmem:[%s7 + $0x18] sm:$0xff]
    %v525 = vld [vmem:[%s7 + $0x20] sm:$0xff]
    %v526 = vld [vmem:[%s7 + $0x28] sm:$0xff]
    %v527 = vld [vmem:[%s7 + $0x30] sm:$0xff]
    %v528 = vld [vmem:[%s7 + $0x38] sm:$0xff]
    %vm529 = vcmask 523264
    %v531 = vsel %vm529, %v497, 0
    %v534 = vsel %vm529, %v498, 0
    %v537 = vsel %vm529, %v499, 0
    %v540 = vsel %vm529, %v500, 0
    %v543 = vsel %vm529, %v501, 0
    %v546 = vsel %vm529, %v502, 0
    %v549 = vsel %vm529, %v503, 0
    %v552 = vsel %vm529, %v504, 0
    %v555 = vsel %vm529, %v505, 0
    %v558 = vsel %vm529, %v506, 0
    %v561 = vsel %vm529, %v507, 0
    %v564 = vsel %vm529, %v508, 0
    %v567 = vsel %vm529, %v509, 0
    %v570 = vsel %vm529, %v510, 0
    %v573 = vsel %vm529, %v511, 0
    %v576 = vsel %vm529, %v512, 0
    %578 = vmatprep.subr.mxu0 0.0
    %579 = vmatpush1.msra.mxu0 %v521
    %580 = vmatprep.subr.mxu0 0.0
    %581 = vmatpush1.msra.mxu0 %v522
    %582 = vmatprep.subr.mxu0 0.0
    %583 = vmatpush1.msra.mxu0 %v523
    %584 = vmatprep.subr.mxu0 0.0
    %585 = vmatpush1.msra.mxu0 %v524
    %586 = vmatprep.subr.mxu0 0.0
    %587 = vmatpush1.msra.mxu0 %v525
    %588 = vmatprep.subr.mxu0 0.0
    %589 = vmatpush1.msra.mxu0 %v526
    %590 = vmatprep.subr.mxu0 0.0
    %591 = vmatpush1.msra.mxu0 %v527
    %592 = vmatprep.subr.mxu0 0.0
    %593 = vmatpush1.msra.mxu0 %v528
    %594 = vmatprep.subr.mxu0 0.0
    %595 = vmatpush1.msra.mxu0 0.0
    %596 = vmatprep.subr.mxu0 0.0
    %597 = vmatpush1.msra.mxu0 0.0
    %598 = vmatprep.subr.mxu0 0.0
    %599 = vmatpush1.msra.mxu0 0.0
    %600 = vmatprep.subr.mxu0 0.0
    %601 = vmatpush1.msra.mxu0 0.0
    %602 = vmatprep.subr.mxu0 0.0
    %603 = vmatpush1.msra.mxu0 0.0
    %604 = vmatprep.subr.mxu0 0.0
    %605 = vmatpush1.msra.mxu0 0.0
    %606 = vmatprep.subr.mxu0 0.0
    %607 = vmatpush1.msra.mxu0 0.0
    %608 = vmatprep.subr.mxu0 0.0
    %609 = vmatpush1.msra.mxu0 0.0
    %610 = vmatprep.subr.mxu0 0.0
    %611 = vmatpush1.msra.mxu0 0.0
    %612 = vmatprep.subr.mxu0 0.0
    %613 = vmatpush1.msra.mxu0 0.0
    %614 = vmatprep.subr.mxu0 0.0
    %615 = vmatpush1.msra.mxu0 0.0
    %616 = vmatprep.subr.mxu0 0.0
    %617 = vmatpush1.msra.mxu0 0.0
    %618 = vmatprep.subr.mxu0 0.0
    %619 = vmatpush1.msra.mxu0 0.0
    %620 = vmatprep.subr.mxu0 0.0
    %621 = vmatpush1.msra.mxu0 0.0
    %622 = vmatprep.subr.mxu0 0.0
    %623 = vmatpush1.msra.mxu0 0.0
    %624 = vmatprep.subr.mxu0 0.0
    %625 = vmatpush1.msra.mxu0 0.0
    %626 = vmatprep.subr.mxu0 0.0
    %627 = vmatpush1.msra.mxu0 0.0
    %628 = vmatprep.subr.mxu0 0.0
    %629 = vmatpush1.msra.mxu0 0.0
    %630 = vmatprep.subr.mxu0 0.0
    %631 = vmatpush1.msra.mxu0 0.0
    %632 = vmatprep.subr.mxu0 0.0
    %633 = vmatpush1.msra.mxu0 0.0
    %634 = vmatprep.subr.mxu0 0.0
    %635 = vmatpush1.msra.mxu0 0.0
    %636 = vmatprep.subr.mxu0 0.0
    %637 = vmatpush1.msra.mxu0 0.0
    %638 = vmatprep.subr.mxu0 0.0
    %639 = vmatpush1.msra.mxu0 0.0
    %640 = vmatprep.subr.mxu0 0.0
    %641 = vmatpush1.msra.mxu0 0.0
    %642 = vmatprep.mubr.f32.mxu0 0.0
    %643 = vmatmul.mubr.f32.gmra.mrb[0].mxu0 %v531
    %v644 = vpop.f32.mrb[0].mxu0
    %v645 = vadd.f32 0.0, %v644
    %v646 = vpop.f32.mrb[0].mxu0
    %647 = vmatprep.mubr.f32.mxu0 0.0
    %648 = vmatmul.mubr.f32.gmra.mrb[0].mxu0 %v534
    %v649 = vpop.f32.mrb[0].mxu0
    %v650 = vadd.f32 0.0, %v649
    %v651 = vpop.f32.mrb[0].mxu0
    %652 = vmatprep.mubr.f32.mxu0 0.0
    %653 = vmatmul.mubr.f32.gmra.mrb[0].mxu0 %v537
    %v654 = vpop.f32.mrb[0].mxu0
    %v655 = vadd.f32 0.0, %v654
    %v656 = vpop.f32.mrb[0].mxu0
    %657 = vmatprep.mubr.f32.mxu0 0.0
    %658 = vmatmul.mubr.f32.gmra.mrb[0].mxu0 %v540
    %v659 = vpop.f32.mrb[0].mxu0
    %v660 = vadd.f32 0.0, %v659
    %v661 = vpop.f32.mrb[0].mxu0
    %662 = vmatprep.mubr.f32.mxu0 0.0
    %663 = vmatmul.mubr.f32.gmra.mrb[0].mxu0 %v543
    %v664 = vpop.f32.mrb[0].mxu0
    %v665 = vadd.f32 0.0, %v664
    %v666 = vpop.f32.mrb[0].mxu0
    %667 = vmatprep.mubr.f32.mxu0 0.0
    %668 = vmatmul.mubr.f32.gmra.mrb[0].mxu0 %v546
    %v669 = vpop.f32.mrb[0].mxu0
    %v670 = vadd.f32 0.0, %v669
    %v671 = vpop.f32.mrb[0].mxu0
    %672 = vmatprep.mubr.f32.mxu0 0.0
    %673 = vmatmul.mubr.f32.gmra.mrb[0].mxu0 %v549
    %v674 = vpop.f32.mrb[0].mxu0
    %v675 = vadd.f32 0.0, %v674
    %v676 = vpop.f32.mrb[0].mxu0
    %677 = vmatprep.mubr.f32.mxu0 0.0
    %678 = vmatmul.mubr.f32.gmra.mrb[0].mxu0 %v552
    %v679 = vpop.f32.mrb[0].mxu0
    %v680 = vadd.f32 0.0, %v679
    %v681 = vpop.f32.mrb[0].mxu0
    %682 = vmatprep.mubr.f32.mxu0 0.0
    %683 = vmatmul.mubr.f32.gmra.mrb[0].mxu0 %v555
    %v684 = vpop.f32.mrb[0].mxu0
    %v685 = vadd.f32 0.0, %v684
    %v686 = vpop.f32.mrb[0].mxu0
    %687 = vmatprep.mubr.f32.mxu0 0.0
    %688 = vmatmul.mubr.f32.gmra.mrb[0].mxu0 %v558
    %v689 = vpop.f32.mrb[0].mxu0
    %v690 = vadd.f32 0.0, %v689
    %v691 = vpop.f32.mrb[0].mxu0
    %692 = vmatprep.mubr.f32.mxu0 0.0
    %693 = vmatmul.mubr.f32.gmra.mrb[0].mxu0 %v561
    %v694 = vpop.f32.mrb[0].mxu0
    %v695 = vadd.f32 0.0, %v694
    %v696 = vpop.f32.mrb[0].mxu0
    %697 = vmatprep.mubr.f32.mxu0 0.0
    %698 = vmatmul.mubr.f32.gmra.mrb[0].mxu0 %v564
    %v699 = vpop.f32.mrb[0].mxu0
    %v700 = vadd.f32 0.0, %v699
    %v701 = vpop.f32.mrb[0].mxu0
    %702 = vmatprep.mubr.f32.mxu0 0.0
    %703 = vmatmul.mubr.f32.gmra.mrb[0].mxu0 %v567
    %v704 = vpop.f32.mrb[0].mxu0
    %v705 = vadd.f32 0.0, %v704
    %v706 = vpop.f32.mrb[0].mxu0
    %707 = vmatprep.mubr.f32.mxu0 0.0
    %708 = vmatmul.mubr.f32.gmra.mrb[0].mxu0 %v570
    %v709 = vpop.f32.mrb[0].mxu0
    %v710 = vadd.f32 0.0, %v709
    %v711 = vpop.f32.mrb[0].mxu0
    %712 = vmatprep.mubr.f32.mxu0 0.0
    %713 = vmatmul.mubr.f32.gmra.mrb[0].mxu0 %v573
    %v714 = vpop.f32.mrb[0].mxu0
    %v715 = vadd.f32 0.0, %v714
    %v716 = vpop.f32.mrb[0].mxu0
    %717 = vmatprep.mubr.f32.mxu0 0.0
    %718 = vmatmul.mubr.f32.gmra.mrb[0].mxu0 %v576
    %v719 = vpop.f32.mrb[0].mxu0
    %v720 = vadd.f32 0.0, %v719
    %v721 = vpop.f32.mrb[0].mxu0
    %722 = vdwg.mxu0
    %v724 = vsel %vm529, %v259, 0
    %v727 = vsel %vm529, %v260, 0
    %v730 = vsel %vm529, %v261, 0
    %v733 = vsel %vm529, %v262, 0
    %v736 = vsel %vm529, %v263, 0
    %v739 = vsel %vm529, %v264, 0
    %v742 = vsel %vm529, %v265, 0
    %v745 = vsel %vm529, %v266, 0
    %v748 = vsel %vm529, %v267, 0
    %v751 = vsel %vm529, %v268, 0
    %v754 = vsel %vm529, %v269, 0
    %v757 = vsel %vm529, %v270, 0
    %v760 = vsel %vm529, %v271, 0
    %v763 = vsel %vm529, %v272, 0
    %v766 = vsel %vm529, %v273, 0
    %v769 = vsel %vm529, %v274, 0
    %771 = vmatprep.subr.mxu0 0.0
    %772 = vmatpush1.msra.mxu0 %v513
    %773 = vmatprep.subr.mxu0 0.0
    %774 = vmatpush1.msra.mxu0 %v514
    %775 = vmatprep.subr.mxu0 0.0
    %776 = vmatpush1.msra.mxu0 %v515
    %777 = vmatprep.subr.mxu0 0.0
    %778 = vmatpush1.msra.mxu0 %v516
    %779 = vmatprep.subr.mxu0 0.0
    %780 = vmatpush1.msra.mxu0 %v517
    %781 = vmatprep.subr.mxu0 0.0
    %782 = vmatpush1.msra.mxu0 %v518
    %783 = vmatprep.subr.mxu0 0.0
    %784 = vmatpush1.msra.mxu0 %v519
    %785 = vmatprep.subr.mxu0 0.0
    %786 = vmatpush1.msra.mxu0 %v520
    %787 = vmatprep.subr.mxu0 0.0
    %788 = vmatpush1.msra.mxu0 0.0
    %789 = vmatprep.subr.mxu0 0.0
    %790 = vmatpush1.msra.mxu0 0.0
    %791 = vmatprep.subr.mxu0 0.0
    %792 = vmatpush1.msra.mxu0 0.0
    %793 = vmatprep.subr.mxu0 0.0
    %794 = vmatpush1.msra.mxu0 0.0
    %795 = vmatprep.subr.mxu0 0.0
    %796 = vmatpush1.msra.mxu0 0.0
    %797 = vmatprep.subr.mxu0 0.0
    %798 = vmatpush1.msra.mxu0 0.0
    %799 = vmatprep.subr.mxu0 0.0
    %800 = vmatpush1.msra.mxu0 0.0
    %801 = vmatprep.subr.mxu0 0.0
    %802 = vmatpush1.msra.mxu0 0.0
    %803 = vmatprep.subr.mxu0 0.0
    %804 = vmatpush1.msra.mxu0 0.0
    %805 = vmatprep.subr.mxu0 0.0
    %806 = vmatpush1.msra.mxu0 0.0
    %807 = vmatprep.subr.mxu0 0.0
    %808 = vmatpush1.msra.mxu0 0.0
    %809 = vmatprep.subr.mxu0 0.0
    %810 = vmatpush1.msra.mxu0 0.0
    %811 = vmatprep.subr.mxu0 0.0
    %812 = vmatpush1.msra.mxu0 0.0
    %813 = vmatprep.subr.mxu0 0.0
    %814 = vmatpush1.msra.mxu0 0.0
    %815 = vmatprep.subr.mxu0 0.0
    %816 = vmatpush1.msra.mxu0 0.0
    %817 = vmatprep.subr.mxu0 0.0
    %818 = vmatpush1.msra.mxu0 0.0
    %819 = vmatprep.subr.mxu0 0.0
    %820 = vmatpush1.msra.mxu0 0.0
    %821 = vmatprep.subr.mxu0 0.0
    %822 = vmatpush1.msra.mxu0 0.0
    %823 = vmatprep.subr.mxu0 0.0
    %824 = vmatpush1.msra.mxu0 0.0
    %825 = vmatprep.subr.mxu0 0.0
    %826 = vmatpush1.msra.mxu0 0.0
    %827 = vmatprep.subr.mxu0 0.0
    %828 = vmatpush1.msra.mxu0 0.0
    %829 = vmatprep.subr.mxu0 0.0
    %830 = vmatpush1.msra.mxu0 0.0
    %831 = vmatprep.subr.mxu0 0.0
    %832 = vmatpush1.msra.mxu0 0.0
    %833 = vmatprep.subr.mxu0 0.0
    %834 = vmatpush1.msra.mxu0 0.0
    %835 = vmatprep.mubr.f32.mxu0 0.0
    %836 = vmatmul.mubr.f32.gmra.mrb[0].mxu0 %v724
    %v837 = vpop.f32.mrb[0].mxu0
    %v838 = vadd.f32 %v645, %v837
    %v839 = vpop.f32.mrb[0].mxu0
    %840 = vmatprep.mubr.f32.mxu0 0.0
    %841 = vmatmul.mubr.f32.gmra.mrb[0].mxu0 %v727
    %v842 = vpop.f32.mrb[0].mxu0
    %v843 = vadd.f32 %v650, %v842
    %v844 = vpop.f32.mrb[0].mxu0
    %845 = vmatprep.mubr.f32.mxu0 0.0
    %846 = vmatmul.mubr.f32.gmra.mrb[0].mxu0 %v730
    %v847 = vpop.f32.mrb[0].mxu0
    %v848 = vadd.f32 %v655, %v847
    %v849 = vpop.f32.mrb[0].mxu0
    %850 = vmatprep.mubr.f32.mxu0 0.0
    %851 = vmatmul.mubr.f32.gmra.mrb[0].mxu0 %v733
    %v852 = vpop.f32.mrb[0].mxu0
    %v853 = vadd.f32 %v660, %v852
    %v854 = vpop.f32.mrb[0].mxu0
    %855 = vmatprep.mubr.f32.mxu0 0.0
    %856 = vmatmul.mubr.f32.gmra.mrb[0].mxu0 %v736
    %v857 = vpop.f32.mrb[0].mxu0
    %v858 = vadd.f32 %v665, %v857
    %v859 = vpop.f32.mrb[0].mxu0
    %860 = vmatprep.mubr.f32.mxu0 0.0
    %861 = vmatmul.mubr.f32.gmra.mrb[0].mxu0 %v739
    %v862 = vpop.f32.mrb[0].mxu0
    %v863 = vadd.f32 %v670, %v862
    %v864 = vpop.f32.mrb[0].mxu0
    %865 = vmatprep.mubr.f32.mxu0 0.0
    %866 = vmatmul.mubr.f32.gmra.mrb[0].mxu0 %v742
    %v867 = vpop.f32.mrb[0].mxu0
    %v868 = vadd.f32 %v675, %v867
    %v869 = vpop.f32.mrb[0].mxu0
    %870 = vmatprep.mubr.f32.mxu0 0.0
    %871 = vmatmul.mubr.f32.gmra.mrb[0].mxu0 %v745
    %v872 = vpop.f32.mrb[0].mxu0
    %v873 = vadd.f32 %v680, %v872
    %v874 = vpop.f32.mrb[0].mxu0
    %875 = vmatprep.mubr.f32.mxu0 0.0
    %876 = vmatmul.mubr.f32.gmra.mrb[0].mxu0 %v748
    %v877 = vpop.f32.mrb[0].mxu0
    %v878 = vadd.f32 %v685, %v877
    %v879 = vpop.f32.mrb[0].mxu0
    %880 = vmatprep.mubr.f32.mxu0 0.0
    %881 = vmatmul.mubr.f32.gmra.mrb[0].mxu0 %v751
    %v882 = vpop.f32.mrb[0].mxu0
    %v883 = vadd.f32 %v690, %v882
    %v884 = vpop.f32.mrb[0].mxu0
    %885 = vmatprep.mubr.f32.mxu0 0.0
    %886 = vmatmul.mubr.f32.gmra.mrb[0].mxu0 %v754
    %v887 = vpop.f32.mrb[0].mxu0
    %v888 = vadd.f32 %v695, %v887
    %v889 = vpop.f32.mrb[0].mxu0
    %890 = vmatprep.mubr.f32.mxu0 0.0
    %891 = vmatmul.mubr.f32.gmra.mrb[0].mxu0 %v757
    %v892 = vpop.f32.mrb[0].mxu0
    %v893 = vadd.f32 %v700, %v892
    %v894 = vpop.f32.mrb[0].mxu0
    %895 = vmatprep.mubr.f32.mxu0 0.0
    %896 = vmatmul.mubr.f32.gmra.mrb[0].mxu0 %v760
    %v897 = vpop.f32.mrb[0].mxu0
    %v898 = vadd.f32 %v705, %v897
    %v899 = vpop.f32.mrb[0].mxu0
    %900 = vmatprep.mubr.f32.mxu0 0.0
    %901 = vmatmul.mubr.f32.gmra.mrb[0].mxu0 %v763
    %v902 = vpop.f32.mrb[0].mxu0
    %v903 = vadd.f32 %v710, %v902
    %v904 = vpop.f32.mrb[0].mxu0
    %905 = vmatprep.mubr.f32.mxu0 0.0
    %906 = vmatmul.mubr.f32.gmra.mrb[0].mxu0 %v766
    %v907 = vpop.f32.mrb[0].mxu0
    %v908 = vadd.f32 %v715, %v907
    %v909 = vpop.f32.mrb[0].mxu0
    %910 = vmatprep.mubr.f32.mxu0 0.0
    %911 = vmatmul.mubr.f32.gmra.mrb[0].mxu0 %v769
    %v912 = vpop.f32.mrb[0].mxu0
    %v913 = vadd.f32 %v720, %v912
    %v914 = vpop.f32.mrb[0].mxu0
    %915 = vdwg.mxu0
    %v916 = vld [vmem:[%s8] sm:$0x1]
    %v918 = vlaneseq
    %v919 = vshrl.u32 %v918, 7
    %v920 = vsub.s32 0, %v919
    %v921 = vrot.slane %v916, %v920
    %v923 = vadd.f32 %v838, %v921
    %v924 = vadd.f32 %v843, %v921
    %v925 = vadd.f32 %v848, %v921
    %v926 = vadd.f32 %v853, %v921
    %v927 = vadd.f32 %v858, %v921
    %v928 = vadd.f32 %v863, %v921
    %v929 = vadd.f32 %v868, %v921
    %v930 = vadd.f32 %v873, %v921
    %v931 = vadd.f32 %v878, %v921
    %v932 = vadd.f32 %v883, %v921
    %v933 = vadd.f32 %v888, %v921
    %v934 = vadd.f32 %v893, %v921
    %v935 = vadd.f32 %v898, %v921
    %v936 = vadd.f32 %v903, %v921
    %v937 = vadd.f32 %v908, %v921
    %v938 = vadd.f32 %v913, %v921
    %v939 = vmax.f32 %v923, 0.0
    %v940 = vmax.f32 %v924, 0.0
    %v941 = vmax.f32 %v925, 0.0
    %v942 = vmax.f32 %v926, 0.0
    %v943 = vmax.f32 %v927, 0.0
    %v944 = vmax.f32 %v928, 0.0
    %v945 = vmax.f32 %v929, 0.0
    %v946 = vmax.f32 %v930, 0.0
    %v947 = vmax.f32 %v931, 0.0
    %v948 = vmax.f32 %v932, 0.0
    %v949 = vmax.f32 %v933, 0.0
    %v950 = vmax.f32 %v934, 0.0
    %v951 = vmax.f32 %v935, 0.0
    %v952 = vmax.f32 %v936, 0.0
    %v953 = vmax.f32 %v937, 0.0
    %v954 = vmax.f32 %v938, 0.0
    %v955 = vld [vmem:[%s9] sm:$0x1]
    %v956 = vld [vmem:[#allocation2] sm:$0x1]
    %958 = vset.pattern.permute.xlu0 0
    %959 = vperm.xlu0 %958, %v956
    %v960 = vpop.permute.xlu0 %959
    %v962 = vlaneseq
    %v963 = vshrl.u32 %v962, 7
    %v964 = vsub.s32 0, %v963
    %v965 = vrot.slane %v960, %v964
    %vm966 = vcmask 261120
    %v968 = vsel %vm966, %v955, 0
    %v971 = vsel %vm966, %v939, 0
    %v974 = vsel %vm966, %v940, 0
    %v977 = vsel %vm966, %v941, 0
    %v980 = vsel %vm966, %v942, 0
    %v983 = vsel %vm966, %v943, 0
    %v986 = vsel %vm966, %v944, 0
    %v989 = vsel %vm966, %v945, 0
    %v992 = vsel %vm966, %v946, 0
    %v995 = vsel %vm966, %v947, 0
    %v998 = vsel %vm966, %v948, 0
    %v1001 = vsel %vm966, %v949, 0
    %v1004 = vsel %vm966, %v950, 0
    %v1007 = vsel %vm966, %v951, 0
    %v1010 = vsel %vm966, %v952, 0
    %v1013 = vsel %vm966, %v953, 0
    %v1016 = vsel %vm966, %v954, 0
    %1018 = vmatprep.subr.mxu0 0.0
    %1019 = vmatpush1.xpose.msra.mxu0 %v971
    %1020 = vmatprep.subr.mxu0 0.0
    %1021 = vmatpush1.xpose.msra.mxu0 %v974
    %1022 = vmatprep.subr.mxu0 0.0
    %1023 = vmatpush1.xpose.msra.mxu0 %v977
    %1024 = vmatprep.subr.mxu0 0.0
    %1025 = vmatpush1.xpose.msra.mxu0 %v980
    %1026 = vmatprep.subr.mxu0 0.0
    %1027 = vmatpush1.xpose.msra.mxu0 %v983
    %1028 = vmatprep.subr.mxu0 0.0
    %1029 = vmatpush1.xpose.msra.mxu0 %v986
    %1030 = vmatprep.subr.mxu0 0.0
    %1031 = vmatpush1.xpose.msra.mxu0 %v989
    %1032 = vmatprep.subr.mxu0 0.0
    %1033 = vmatpush1.xpose.msra.mxu0 %v992
    %1034 = vmatprep.subr.mxu0 0.0
    %1035 = vmatpush1.xpose.msra.mxu0 %v995
    %1036 = vmatprep.subr.mxu0 0.0
    %1037 = vmatpush1.xpose.msra.mxu0 %v998
    %1038 = vmatprep.subr.mxu0 0.0
    %1039 = vmatpush1.xpose.msra.mxu0 %v1001
    %1040 = vmatprep.subr.mxu0 0.0
    %1041 = vmatpush1.xpose.msra.mxu0 %v1004
    %1042 = vmatprep.subr.mxu0 0.0
    %1043 = vmatpush1.xpose.msra.mxu0 %v1007
    %1044 = vmatprep.subr.mxu0 0.0
    %1045 = vmatpush1.xpose.msra.mxu0 %v1010
    %1046 = vmatprep.subr.mxu0 0.0
    %1047 = vmatpush1.xpose.msra.mxu0 %v1013
    %1048 = vmatprep.subr.mxu0 0.0
    %1049 = vmatpush1.xpose.msra.mxu0 %v1016
    %1050 = vmatprep.subr.mxu0 0.0
    %1051 = vmatpush1.xpose.msra.mxu0 0.0
    %1052 = vmatprep.subr.mxu0 0.0
    %1053 = vmatpush1.xpose.msra.mxu0 0.0
    %1054 = vmatprep.subr.mxu0 0.0
    %1055 = vmatpush1.xpose.msra.mxu0 0.0
    %1056 = vmatprep.subr.mxu0 0.0
    %1057 = vmatpush1.xpose.msra.mxu0 0.0
    %1058 = vmatprep.subr.mxu0 0.0
    %1059 = vmatpush1.xpose.msra.mxu0 0.0
    %1060 = vmatprep.subr.mxu0 0.0
    %1061 = vmatpush1.xpose.msra.mxu0 0.0
    %1062 = vmatprep.subr.mxu0 0.0
    %1063 = vmatpush1.xpose.msra.mxu0 0.0
    %1064 = vmatprep.subr.mxu0 0.0
    %1065 = vmatpush1.xpose.msra.mxu0 0.0
    %1066 = vmatprep.subr.mxu0 0.0
    %1067 = vmatpush1.xpose.msra.mxu0 0.0
    %1068 = vmatprep.subr.mxu0 0.0
    %1069 = vmatpush1.xpose.msra.mxu0 0.0
    %1070 = vmatprep.subr.mxu0 0.0
    %1071 = vmatpush1.xpose.msra.mxu0 0.0
    %1072 = vmatprep.subr.mxu0 0.0
    %1073 = vmatpush1.xpose.msra.mxu0 0.0
    %1074 = vmatprep.subr.mxu0 0.0
    %1075 = vmatpush1.xpose.msra.mxu0 0.0
    %1076 = vmatprep.subr.mxu0 0.0
    %1077 = vmatpush1.xpose.msra.mxu0 0.0
    %1078 = vmatprep.subr.mxu0 0.0
    %1079 = vmatpush1.xpose.msra.mxu0 0.0
    %1080 = vmatprep.subr.mxu0 0.0
    %1081 = vmatpush1.xpose.msra.mxu0 0.0
    %1082 = vmatprep.mubr.f32.mxu0 0.0
    %1083 = vmatmul.mubr.f32.gmra.mrb[0].mxu0 %v968
    %v1084 = vpop.f32.mrb[0].mxu0
    %v1085 = vadd.f32 %v965, %v1084
    %v1086 = vpop.f32.mrb[0].mxu0
    %1087 = vdwg.mxu0
    %1088 = vst [vmem:[#allocation3] sm:$0x1] %v1085
    // Predicated region
    $region46: #{tpu_custom_call.1} parent=1 // pred_check
      _
    $region47: #{tpu_custom_call.1} parent=1 // pred_check_branch
      %1090 = sbr.rel (0) target = $region49
    $region48: #{tpu_custom_call.1} parent=1 // pred_region
      %s1092 = ssub.s32 16, 16
      %1093 = vsyncadd [#allocation4], %s1092
      %s1095 = sshll.u32 [#allocation3], 4
      %s1096 = int_to_ptr.vmem [resolvable:$true] %s1095
      %1098 = dma.vmem_to_hbm [thread:$0]  %s1096, 16, %s11, [#allocation4]
    $region49: #{tpu_custom_call.1} parent=1 // pred_fallthru
      _
    // Predicated region
    $region50: #{tpu_custom_call.1} parent=1 // pred_check
      _
    $region51: #{tpu_custom_call.1} parent=1 // pred_check_branch
      %1100 = sbr.rel (0) target = $region53
    $region52: #{tpu_custom_call.1} parent=1 // pred_region
      %1101 = dma.done [#allocation4], 16
    $region53: #{tpu_custom_call.1} parent=1 // pred_fallthru
      _
    %1102 = vsyncpa [#allocation4], 1

</llo_original>
